<compile_context>
chip_gen: v7x
topology: tpu7x:2x2x1
jax: 0.10.0
libtpu: 0.0.40
codegen_flags: <defaults>
</compile_context>

<pallas_src>
import jax
import jax.numpy as jnp
from jax.experimental import pallas as pl
from jax.experimental.pallas import tpu as pltpu


def _tom_matmul_kernel(x_ref, w_ref, b_ref, o_ref, acc_ref):
    """One (batch-tile, out-tile) pair: accumulate X_tile @ W_tile over k, add bias at end."""
    k = pl.program_id(2)

    @pl.when(k == 0)
    def _():
        acc_ref[...] = jnp.zeros_like(acc_ref)

    acc_ref[...] += jnp.dot(x_ref[...], w_ref[...],
                            preferred_element_type=jnp.float32)

    @pl.when(k == pl.num_programs(2) - 1)
    def _():
        o_ref[...] = (acc_ref[...] + b_ref[...].astype(jnp.float32)).astype(o_ref.dtype)


def _prep_params(w: jax.Array, b: jax.Array, extra_len: int):
    """Fold TransitionOnlyModel's input/output masks into the linear params (one-time)."""
    F, O = w.shape
    # PyTorch X[:, -0:] = 0 zeroes the whole input -> K = 0 active feature columns.
    K = 0 if extra_len == 0 else max(F - extra_len, 0)

    # out[:, -1] = 0  <=>  W[:, -1] = 0 and b[-1] = 0.
    w = w.at[:, O - 1].set(0.0)
    b = b.at[O - 1].set(0.0)

    # Narrow the contraction only when the K slice is lane-aligned for X
    # (block lane dims must be multiples of 128 unless they span the full axis).
    narrow = (K > 0) and (K < F) and (K % 128 == 0)
    if not narrow:
        if K < F:
            # Fold the input mask into W instead: zeroed rows contribute nothing.
            w = w.at[K:, :].set(0.0)
        K = F  # feed the full contraction to the kernel
    return w, b, K


def _pick_tile(dim: int, candidates) -> int:
    """Largest aligned candidate dividing `dim`; else the full dim (always legal)."""
    for cand in candidates:
        if dim % cand == 0 and dim >= cand:
            return cand
    return dim


def transition_only_model(x: jax.Array, w: jax.Array, b: jax.Array,
                          extra_len: int) -> jax.Array:
    """x: (B, F); w: (F, O) (= PyTorch weight.T); b: (O,). Returns (B, O)."""
    B, F = x.shape
    O = w.shape[1]

    w_eff, b_eff, Kc = _prep_params(w, b, extra_len)
    b2 = b_eff.reshape(1, O)

    # MXU-friendly tiles. Constraints: sublane dims div by 8 (or full), lane dims div by
    # 128 (or full). Prefer >= 2 batch tiles so the pipeline double-buffers and megacore
    # can split the batch across TensorCores.
    tm = _pick_tile(B, (256, 128, 64, 32, 16, 8)) if B >= 16 else B
    if B % tm == 0 and B // tm < 2:
        for cand in (128, 64, 32, 16, 8):
            if B % cand == 0 and B // cand >= 2:
                tm = cand
                break
    tn = _pick_tile(O, (256, 128))
    tk = _pick_tile(Kc, (512, 256, 128))

    grid = (B // tm, O // tn, Kc // tk)

    # Explicit VMEM budget: 2x (double buffering) for X/W/out tiles + f32 accumulator
    # + resident bias, with headroom; clamped to [16 MiB, 32 MiB] so it is valid on
    # v5e/v6e/v7x scoped-VMEM limits.
    x_bytes = jnp.dtype(x.dtype).itemsize
    w_bytes = jnp.dtype(w_eff.dtype).itemsize
    need = (2 * (tm * tk * x_bytes + tk * tn * w_bytes + tm * tn * x_bytes)
            + tm * tn * 4 + 2 * tn * w_bytes)
    vmem_limit = int(min(max(2 * need + (4 << 20), 16 << 20), 32 << 20))

    return pl.pallas_call(
        _tom_matmul_kernel,
        out_shape=jax.ShapeDtypeStruct((B, O), x.dtype),
        grid_spec=pltpu.PrefetchScalarGridSpec(
            num_scalar_prefetch=0,
            grid=grid,
            in_specs=[
                # Only the first Kc feature columns of X are ever DMA'd.
                pl.BlockSpec((tm, tk), lambda i, j, k: (i, k)),
                # Only the first Kc rows of W are ever DMA'd.
                pl.BlockSpec((tk, tn), lambda i, j, k: (k, j)),
                # Bias: constant along the reduction axis -> resident in VMEM.
                pl.BlockSpec((1, tn), lambda i, j, k: (0, j)),
            ],
            out_specs=pl.BlockSpec((tm, tn), lambda i, j, k: (i, j)),
            scratch_shapes=[pltpu.VMEM((tm, tn), jnp.float32)],
        ),
        compiler_params=pltpu.CompilerParams(
            dimension_semantics=("parallel", "parallel", "arbitrary"),
            vmem_limit_bytes=vmem_limit,
        ),
    )(x, w_eff, b2)


def _reference(x, w, b, extra_len):
    """Pure-JAX reference mirroring the PyTorch forward (incl. the -0 quirk)."""
    F = x.shape[1]
    K = 0 if extra_len == 0 else max(F - extra_len, 0)
    col = jnp.arange(F)[None, :]
    xm = jnp.where(col < K, x, 0.0)
    out = jnp.dot(xm, w, precision=jax.lax.Precision.HIGHEST) + b
    out = out.at[:, -1].set(0.0)
    return out


if __name__ == "__main__":
    key = jax.random.PRNGKey(0)
    kx, kw, kb = jax.random.split(key, 3)

    # Small but TPU-friendly shapes: lane-dense output (O multiple of 128),
    # batch large enough for a multi-tile grid.
    B, F, O = 256, 256, 256
    x = jax.random.normal(kx, (B, F), dtype=jnp.float32)
    bound = 1.0 / (F ** 0.5)  # deterministic "nn.Linear"-style init scale
    w = jax.random.uniform(kw, (F, O), dtype=jnp.float32, minval=-bound, maxval=bound)
    bias = jax.random.uniform(kb, (O,), dtype=jnp.float32, minval=-bound, maxval=bound)

    # extra_len=128 -> K=128 (lane-aligned): narrowed-contraction path (less DMA + MXU work).
    # extra_len=64  -> K=192 (unaligned):   input mask folded into zeroed W rows.
    # extra_len=0   -> PyTorch -0 quirk:    whole input zeroed, output = masked bias.
    for extra_len in (128, 64, 0):
        out = jax.block_until_ready(transition_only_model(x, w, bias, extra_len))
        ref = _reference(x, w, bias, extra_len)
        assert out.shape == (B, O)
        assert jnp.allclose(out, ref, atol=1e-4, rtol=1e-4), f"mismatch (extra_len={extra_len})"
        assert jnp.all(out[:, -1] == 0.0), "last output column not zeroed"

    print("KERNEL_OK")
</pallas_src>

<mosaic_0001>
module attributes {stable_mosaic.version = 11 : i64} {
  func.func @_tom_matmul_kernel(%arg0: i32, %arg1: i32, %arg2: i32, %arg3: memref<128x128xf32, #tpu.memory_space<vmem>>, %arg4: memref<128x256xf32, #tpu.memory_space<vmem>>, %arg5: memref<1x256xf32, #tpu.memory_space<vmem>>, %arg6: memref<128x256xf32, #tpu.memory_space<vmem>>, %arg7: memref<128x256xf32, #tpu.memory_space<vmem>>) attributes {dimension_semantics = [#tpu.dimension_semantics<parallel>, #tpu.dimension_semantics<parallel>, #tpu.dimension_semantics<arbitrary>], iteration_bounds = array<i64: 2, 1, 1>, scalar_prefetch = 0 : i64, scratch_operands = 1 : i64, tpu.core_type = #tpu.core_type<tc>, window_params = [{transform_indices = @transform_0, window_bounds = array<i64: 128, 128>}, {transform_indices = @transform_1, window_bounds = array<i64: 128, 256>}, {transform_indices = @transform_2, window_bounds = array<i64: 1, 256>}, {transform_indices = @transform_3, window_bounds = array<i64: 128, 256>}]} {
    %c0_i32 = arith.constant 0 : i32
    %0 = arith.cmpi eq, %arg2, %c0_i32 : i32
    %1 = arith.extui %0 : i1 to i32
    %c0_i32_0 = arith.constant 0 : i32
    %2 = arith.cmpi ne, %1, %c0_i32_0 : i32
    scf.if %2 {
      %cst_10 = arith.constant 0.000000e+00 : f32
      %12 = vector.broadcast %cst_10 : f32 to vector<128x256xf32>
      %c0_11 = arith.constant 0 : index
      %c0_12 = arith.constant 0 : index
      %13 = vector.load %arg7[%c0_11, %c0_12] : memref<128x256xf32, #tpu.memory_space<vmem>>, vector<128x256xf32>
      tpu.vector_store %arg7[%c0_11, %c0_12], %12 {strides = array<i32>} : memref<128x256xf32, #tpu.memory_space<vmem>>, vector<128x256xf32>,
    } else {
    }
    %c0 = arith.constant 0 : index
    %c0_1 = arith.constant 0 : index
    %3 = vector.load %arg7[%c0, %c0_1] : memref<128x256xf32, #tpu.memory_space<vmem>>, vector<128x256xf32>
    %c0_2 = arith.constant 0 : index
    %c0_3 = arith.constant 0 : index
    %4 = vector.load %arg3[%c0_2, %c0_3] : memref<128x128xf32, #tpu.memory_space<vmem>>, vector<128x128xf32>
    %c0_4 = arith.constant 0 : index
    %c0_5 = arith.constant 0 : index
    %5 = vector.load %arg4[%c0_4, %c0_5] : memref<128x256xf32, #tpu.memory_space<vmem>>, vector<128x256xf32>
    %cst = arith.constant dense<0.000000e+00> : vector<128x256xf32>
    %6 = tpu.matmul %4, %5, %cst {dimension_numbers = #tpu.dot_dimension_numbers<[1], [0], [0], [1], [0, 0, 1, 1], [], []>} : vector<128x128xf32>, vector<128x256xf32>, vector<128x256xf32> -> vector<128x256xf32>
    %7 = arith.addf %3, %6 : vector<128x256xf32>
    %c0_6 = arith.constant 0 : index
    %c0_7 = arith.constant 0 : index
    %8 = vector.load %arg7[%c0_6, %c0_7] : memref<128x256xf32, #tpu.memory_space<vmem>>, vector<128x256xf32>
    tpu.vector_store %arg7[%c0_6, %c0_7], %7 {strides = array<i32>} : memref<128x256xf32, #tpu.memory_space<vmem>>, vector<128x256xf32>,
    %c0_i32_8 = arith.constant 0 : i32
    %9 = arith.cmpi eq, %arg2, %c0_i32_8 : i32
    %10 = arith.extui %9 : i1 to i32
    %c0_i32_9 = arith.constant 0 : i32
    %11 = arith.cmpi ne, %10, %c0_i32_9 : i32
    scf.if %11 {
      %c0_10 = arith.constant 0 : index
      %c0_11 = arith.constant 0 : index
      %12 = vector.load %arg7[%c0_10, %c0_11] : memref<128x256xf32, #tpu.memory_space<vmem>>, vector<128x256xf32>
      %c0_12 = arith.constant 0 : index
      %c0_13 = arith.constant 0 : index
      %13 = vector.load %arg5[%c0_12, %c0_13] : memref<1x256xf32, #tpu.memory_space<vmem>>, vector<1x256xf32>
      %14 = vector.broadcast %13 : vector<1x256xf32> to vector<128x256xf32>
      %15 = arith.addf %12, %14 : vector<128x256xf32>
      %c0_14 = arith.constant 0 : index
      %c0_15 = arith.constant 0 : index
      %16 = vector.load %arg6[%c0_14, %c0_15] : memref<128x256xf32, #tpu.memory_space<vmem>>, vector<128x256xf32>
      tpu.vector_store %arg6[%c0_14, %c0_15], %15 {strides = array<i32>} : memref<128x256xf32, #tpu.memory_space<vmem>>, vector<128x256xf32>,
    } else {
    }
    return
  }
  func.func @transform_0(%arg0: i32, %arg1: i32, %arg2: i32) -> (i32, i32) {
    %c0_i32 = arith.constant 0 : i32
    return %arg0, %arg2 : i32, i32
  }
  func.func @transform_1(%arg0: i32, %arg1: i32, %arg2: i32) -> (i32, i32) {
    %c0_i32 = arith.constant 0 : i32
    return %arg2, %arg1 : i32, i32
  }
  func.func @transform_2(%arg0: i32, %arg1: i32, %arg2: i32) -> (i32, i32) {
    %c0_i32 = arith.constant 0 : i32
    %c0_i32_0 = arith.constant 0 : i32
    return %c0_i32, %arg1 : i32, i32
  }
  func.func @transform_3(%arg0: i32, %arg1: i32, %arg2: i32) -> (i32, i32) {
    %c0_i32 = arith.constant 0 : i32
    return %arg0, %arg1 : i32, i32
  }
}

</mosaic_0001>

<llo_original>
// kernel: tpu_custom_call.1
$region0: #{tpu_custom_call.1}
  #allocation0 [shape = 'u32[]', space=smem, size = 0x4, offset = 0x4, fixed_abs, tag = 'smem constant byte address 0x4 - core index']
  #allocation1 [shape = 'u32[144,128]{1,0:T(1,128)}', space=vmem, size = 0x12000, scoped, tag = 'internal scratch']
  #allocation2 [shape = 'f32[128,256]{1,0:T(8,128)}', space=vmem, size = 0x20000, scoped, tag = 'scratch operand']
  %s0 = inlined_call_operand.hbm [shape: f32[256,256], index: 0, kind: input, shape index: {}]
  %s1 = inlined_call_operand.hbm [shape: f32[256,256], index: 1, kind: input, shape index: {}]
  %s2 = inlined_call_operand.vmem [shape: f32[1,256], index: 2, kind: input, shape index: {}]
  %s3 = inlined_call_operand.hbm [shape: f32[256,256], index: 3, kind: output, shape index: {}]
  %s4 = sld [smem:[#allocation0]]
  $region61: #{tpu_custom_call.1} parent=0
    _
  %s6 = ssub.s32 1, %s4
  %s7 = scalar_select 0, %s6, %s4
  $region1: #{tpu_custom_call.1} parent=0
    #allocation3 [shape = 'u8[131072]{0}', space=vmem, size = 0x20000, scoped, tag = 'input window, operand 0']
    #allocation4 [shape = 's32[2]{0}', space=sflag, size = 0x8, scoped, tag = 'scoped memory for tpu_custom_call.1']
    #allocation5 [shape = 's32[2]{0}', space=sflag, size = 0x8, scoped, tag = 'scoped memory for tpu_custom_call.1']
    #allocation6 [shape = 'u8[131072]{0}', space=vmem, size = 0x20000, scoped, tag = 'input window, operand 1, single buffered']
    #allocation7 [shape = 's32[1]{0}', space=sflag, size = 0x4, scoped, tag = 'scoped memory for tpu_custom_call.1']
    #allocation8 [shape = 'u8[262144]{0}', space=vmem, size = 0x40000, scoped, tag = 'output window, operand 0']
    %8 = vsyncpa [#allocation4], 0
    %s9 = scalar_lea.sflag [#allocation4], 1
    %10 = vsyncpa %s9, 0
    %11 = vsyncpa [#allocation7], 0
    %12 = vsyncpa [#allocation5], 0
    %s13 = scalar_lea.sflag [#allocation5], 1
    %14 = vsyncpa %s13, 0
    loop: start=0, step=1, limit=4
    $region2: #{tpu_custom_call.1} parent=1 // loop_pre_header
      _
    $region3: #{tpu_custom_call.1} parent=1 // loop_header
      %s16 = sphi 0, %s20
      %p17 = scmp.ge.s32.totalorder %s16, 4
      %s23 = sphi 0, %s42
      %s24 = sphi 0, %s38
      %s25 = sphi 0, %s34
      %s26 = sphi 0, %s23
      %s27 = sphi 0, %s24
      %s28 = sphi 0, %s25
      %s29 = sphi 0, %s26
      %s30 = sphi 0, %s27
      %s31 = sphi 0, %s28
      %s47 = sphi 0, %s49
      %s50 = sphi 0, %s47
      %s51 = sphi 0, %s50
      %s67 = sphi 0, %s51
      %s75 = sphi 0, %s77
      %s78 = sphi 0, %s75
      %s79 = sphi 0, %s78
      %s95 = sphi 0, %s79
      %s101 = sphi 0, %s103
      %s104 = sphi 0, %s101
      %s105 = sphi 0, %s104
      %s121 = sphi 0, %s105
      %s129 = sphi 0, %s131
      %s132 = sphi 0, %s129
      %s133 = sphi 0, %s132
      %s149 = sphi 0, %s133
    $region4: #{tpu_custom_call.1} parent=1 // loop_header_branch
      %19 = sbr.rel (%p17) target = $region8
    $region5: #{tpu_custom_call.1} parent=1 // loop_body
      %s21 = ssub.s32 %s16, 1
      %s22 = ssub.s32 %s16, 2
      %s32 = sadd.s32 1, %s25
      %p33 = scmp.ge.s32.totalorder %s32, 1
      %s34 = scalar_select %p33, 0, %s32
      %s35 = sadd.s32 1, %s24
      %s36 = scalar_select %p33, %s35, %s24
      %p37 = scmp.ge.s32.totalorder %s36, 1
      %s38 = scalar_select %p37, 0, %s36
      %s39 = sadd.s32 1, %s23
      %s40 = scalar_select %p37, %s39, %s23
      %p41 = scmp.ge.s32.totalorder %s40, 2
      %s42 = scalar_select %p41, 0, %s40
      %s43 = ssub.s32 %s23, %s42
      %s44 = ssub.s32 %s25, %s34
      %s45 = sor.u32 %s43, %s44
      %p46 = scmp.eq.s32.totalorder %s45, 0
      %s48 = sadd.s32 %s47, 1
      %s49 = scalar_select %p46, %s47, %s48
      %p52 = pneg %p46
      %p53 = scmp.eq.s32.totalorder %s16, 1
      %p54 = por %p52, %p53
      %p55 = scmp.ne.s32.totalorder %s47, %s50
      %p56 = scmp.eq.s32.totalorder %s16, 0
      %p57 = por %p55, %p56
      %p58 = scmp.ne.s32.totalorder %s47, %s50
      %p59 = scmp.eq.s32.totalorder %s21, 1
      %p60 = por %p58, %p59
      %p61 = scmp.ne.s32.totalorder %s50, %s51
      %p62 = scmp.eq.s32.totalorder %s21, 0
      %p63 = por %p61, %p62
      %p64 = scmp.ne.s32.totalorder %s50, %s51
      %p65 = scmp.eq.s32.totalorder %s22, 1
      %p66 = por %p64, %p65
      %p68 = scmp.ne.s32.totalorder %s51, %s67
      %p69 = scmp.eq.s32.totalorder %s22, 0
      %p70 = por %p68, %p69
      %s71 = ssub.s32 %s25, %s34
      %s72 = ssub.s32 %s24, %s38
      %s73 = sor.u32 %s71, %s72
      %p74 = scmp.eq.s32.totalorder %s73, 0
      %s76 = sadd.s32 %s75, 1
      %s77 = scalar_select %p74, %s75, %s76
      %p80 = pneg %p74
      %p81 = scmp.eq.s32.totalorder %s16, 1
      %p82 = por %p80, %p81
      %p83 = scmp.ne.s32.totalorder %s75, %s78
      %p84 = scmp.eq.s32.totalorder %s16, 0
      %p85 = por %p83, %p84
      %p86 = scmp.ne.s32.totalorder %s75, %s78
      %p87 = scmp.eq.s32.totalorder %s21, 1
      %p88 = por %p86, %p87
      %p89 = scmp.ne.s32.totalorder %s78, %s79
      %p90 = scmp.eq.s32.totalorder %s21, 0
      %p91 = por %p89, %p90
      %p92 = scmp.ne.s32.totalorder %s78, %s79
      %p93 = scmp.eq.s32.totalorder %s22, 1
      %p94 = por %p92, %p93
      %p96 = scmp.ne.s32.totalorder %s79, %s95
      %p97 = scmp.eq.s32.totalorder %s22, 0
      %p98 = por %p96, %p97
      %s99 = ssub.s32 %s24, %s38
      %p100 = scmp.eq.s32.totalorder %s99, 0
      %s102 = sadd.s32 %s101, 1
      %s103 = scalar_select %p100, %s101, %s102
      %p106 = pneg %p100
      %p107 = scmp.eq.s32.totalorder %s16, 1
      %p108 = por %p106, %p107
      %p109 = scmp.ne.s32.totalorder %s101, %s104
      %p110 = scmp.eq.s32.totalorder %s16, 0
      %p111 = por %p109, %p110
      %p112 = scmp.ne.s32.totalorder %s101, %s104
      %p113 = scmp.eq.s32.totalorder %s21, 1
      %p114 = por %p112, %p113
      %p115 = scmp.ne.s32.totalorder %s104, %s105
      %p116 = scmp.eq.s32.totalorder %s21, 0
      %p117 = por %p115, %p116
      %p118 = scmp.ne.s32.totalorder %s104, %s105
      %p119 = scmp.eq.s32.totalorder %s22, 1
      %p120 = por %p118, %p119
      %p122 = scmp.ne.s32.totalorder %s105, %s121
      %p123 = scmp.eq.s32.totalorder %s22, 0
      %p124 = por %p122, %p123
      %s125 = ssub.s32 %s23, %s42
      %s126 = ssub.s32 %s24, %s38
      %s127 = sor.u32 %s125, %s126
      %p128 = scmp.eq.s32.totalorder %s127, 0
      %s130 = sadd.s32 %s129, 1
      %s131 = scalar_select %p128, %s129, %s130
      %p134 = pneg %p128
      %p135 = scmp.eq.s32.totalorder %s16, 1
      %p136 = por %p134, %p135
      %p137 = scmp.ne.s32.totalorder %s129, %s132
      %p138 = scmp.eq.s32.totalorder %s16, 0
      %p139 = por %p137, %p138
      %p140 = scmp.ne.s32.totalorder %s129, %s132
      %p141 = scmp.eq.s32.totalorder %s21, 1
      %p142 = por %p140, %p141
      %p143 = scmp.ne.s32.totalorder %s132, %s133
      %p144 = scmp.eq.s32.totalorder %s21, 0
      %p145 = por %p143, %p144
      %p146 = scmp.ne.s32.totalorder %s132, %s133
      %p147 = scmp.eq.s32.totalorder %s22, 1
      %p148 = por %p146, %p147
      %p150 = scmp.ne.s32.totalorder %s133, %s149
      %p151 = scmp.eq.s32.totalorder %s22, 0
      %p152 = por %p150, %p151
      %p153 = scmp.le.s32.totalorder 1, %s16
      %p154 = scmp.lt.s32.totalorder %s16, 3
      %p155 = pnand %p153, %p154
      %p156 = pneg %p155
      // Predicated region
      $region9: #{tpu_custom_call.1} parent=5 // pred_check
        _
      $region10: #{tpu_custom_call.1} parent=5 // pred_check_branch
        %158 = sbr.rel (%p155) target = $region12
      $region11: #{tpu_custom_call.1} parent=5 // pred_region
        %s159 = ssub.s32 %s16, 1
        // Predicated region
        $region13: #{tpu_custom_call.1} parent=11 // pred_check
          %p160 = pneg %p91
        $region14: #{tpu_custom_call.1} parent=11 // pred_check_branch
          %162 = sbr.rel (%p160) target = $region16
        $region15: #{tpu_custom_call.1} parent=11 // pred_region
          %s163 = smul.u32 16, %s28
          %s164 = smul.u32 2, %s27
          %s166 = ssub.s32 4096, 4096
          %167 = vsyncadd [#allocation7], %s166
          %s168 = smul.addr %s163, 2
          %s169 = sadd.s32 %s164, %s168
          %s170 = smul.addr %s169, 128
          %s171 = scalar_lea.hbm %s1, %s170
          %s172 = sshll.u32 [#allocation6], 4
          %s173 = int_to_ptr.vmem [resolvable:$true] %s172
          %178 = dma.hbm_to_vmem [thread:$0]  %s171, 4096, %s173, [#allocation7], 256, 256, 16
        $region16: #{tpu_custom_call.1} parent=11 // pred_fallthru
          _
        // Predicated region
        $region17: #{tpu_custom_call.1} parent=11 // pred_check
          %p179 = pneg %p117
        $region18: #{tpu_custom_call.1} parent=11 // pred_check_branch
          %181 = sbr.rel (%p179) target = $region20
        $region19: #{tpu_custom_call.1} parent=11 // pred_region
          %s182 = smul.u32 2, %s27
          %p183 = scmp.lt.s32.totalorder %s182, 1
          %s184 = scalar_select %p183, %s182, 1
          %s185 = scalar_lea.vmem %s2, %s184
          %s186 = smul.u32 2, %s27
        $region20: #{tpu_custom_call.1} parent=11 // pred_fallthru
          _
      $region12: #{tpu_custom_call.1} parent=5 // pred_fallthru
        _
      %p187 = scmp.lt.s32.totalorder %s16, 2
      // Predicated region
      $region21: #{tpu_custom_call.1} parent=5 // pred_check
        %p188 = pneg %p187
      $region22: #{tpu_custom_call.1} parent=5 // pred_check_branch
        %190 = sbr.rel (%p188) target = $region24
      $region23: #{tpu_custom_call.1} parent=5 // pred_region
        // Predicated region
        $region25: #{tpu_custom_call.1} parent=23 // pred_check
          %p191 = pneg %p57
        $region26: #{tpu_custom_call.1} parent=23 // pred_check_branch
          %193 = sbr.rel (%p191) target = $region28
        $region27: #{tpu_custom_call.1} parent=23 // pred_region
          %s194 = sand.u32 %s47, 1
          %s195 = scalar_lea.sflag [#allocation4], %s194
          %s196 = sand.u32 %s47, 1
          %s197 = smul.addr %s196, 128
          %s198 = scalar_lea.vmem [#allocation3], %s197
          %s199 = smul.u32 16, %s23
          %s201 = ssub.s32 2048, 2048
          %202 = vsyncadd %s195, %s201
          %s203 = smul.addr %s199, 2
          %s204 = sadd.s32 %s25, %s203
          %s205 = smul.addr %s204, 128
          %s206 = scalar_lea.hbm %s0, %s205
          %s207 = sshll.u32 %s198, 4
          %s208 = int_to_ptr.vmem [resolvable:$true] %s207
          %213 = dma.hbm_to_vmem [thread:$0]  %s206, 2048, %s208, %s195, 256, 128, 8
        $region28: #{tpu_custom_call.1} parent=23 // pred_fallthru
          _
      $region24: #{tpu_custom_call.1} parent=5 // pred_fallthru
        _
      %p214 = scmp.le.s32.totalorder 1, %s16
      %p215 = scmp.lt.s32.totalorder %s16, 3
      %p216 = pnand %p214, %p215
      %p217 = pneg %p216
      // Predicated region
      $region29: #{tpu_custom_call.1} parent=5 // pred_check
        _
      $region30: #{tpu_custom_call.1} parent=5 // pred_check_branch
        %219 = sbr.rel (%p216) target = $region32
      $region31: #{tpu_custom_call.1} parent=5 // pred_region
        %s220 = ssub.s32 %s16, 1
        %s221 = sand.u32 %s50, 1
        %s222 = scalar_lea.sflag [#allocation4], %s221
        %s223 = sand.u32 %s50, 1
        %s224 = smul.addr %s223, 128
        %s225 = scalar_lea.vmem [#allocation3], %s224
        // Predicated region
        $region33: #{tpu_custom_call.1} parent=31 // pred_check
          %p226 = pneg %p63
        $region34: #{tpu_custom_call.1} parent=31 // pred_check_branch
          %228 = sbr.rel (%p226) target = $region36
        $region35: #{tpu_custom_call.1} parent=31 // pred_region
          %229 = dma.done %s222, 2048
        $region36: #{tpu_custom_call.1} parent=31 // pred_fallthru
          _
        // Predicated region
        $region37: #{tpu_custom_call.1} parent=31 // pred_check
          %p230 = pneg %p91
        $region38: #{tpu_custom_call.1} parent=31 // pred_check_branch
          %232 = sbr.rel (%p230) target = $region40
        $region39: #{tpu_custom_call.1} parent=31 // pred_region
          %233 = dma.done [#allocation7], 4096
        $region40: #{tpu_custom_call.1} parent=31 // pred_fallthru
          _
        %s234 = sand.u32 %s50, 1
        %s235 = scalar_lea.sflag [#allocation4], %s234
        %s236 = sand.u32 %s50, 1
        %s237 = smul.addr %s236, 128
        %s238 = scalar_lea.vmem [#allocation3], %s237
        %p239 = pneg %p63
        %p240 = pneg %p60
        %p241 = pneg %p91
        %p242 = pneg %p88
        %s243 = smul.u32 2, %s27
        %p244 = scmp.lt.s32.totalorder %s243, 1
        %s245 = scalar_select %p244, %s243, 1
        %s246 = scalar_lea.vmem %s2, %s245
        %p247 = pneg %p117
        %p248 = pneg %p114
        %p249 = pneg %p145
        %p250 = pneg %p142
        %s251 = sand.u32 %s132, 1
        %s252 = scalar_lea.sflag [#allocation5], %s251
        %s253 = sand.u32 %s132, 1
        %s254 = smul.addr %s253, 256
        %s255 = scalar_lea.vmem [#allocation8], %s254
        %s256 = smul.u32 16, %s26
        %s257 = smul.u32 16, %s28
        %s258 = smul.u32 2, %s27
        %s259 = smul.u32 2, %s27
        %p260 = scmp.lt.s32.totalorder %s259, 1
        %s261 = scalar_select %p260, %s259, 1
        %s262 = scalar_lea.vmem %s2, %s261
        %s263 = smul.u32 2, %s27
        %s264 = smul.u32 16, %s26
        %s265 = smul.u32 2, %s27
        %p266 = scmp.eq.s32.totalorder %s28, 0
        // Predicated region
        $region41: #{tpu_custom_call.1} parent=31 // pred_check
          %p267 = pneg %p266
        $region42: #{tpu_custom_call.1} parent=31 // pred_check_branch
          %269 = sbr.rel (%p267) target = $region44
        $region43: #{tpu_custom_call.1} parent=31 // pred_region
          %270 = vst [vmem:[#allocation2] sm:$0xff] 0.0
          %271 = vst [vmem:[#allocation2 + $0x8] sm:$0xff] 0.0
          %272 = vst [vmem:[#allocation2 + $0x10] sm:$0xff] 0.0
          %273 = vst [vmem:[#allocation2 + $0x18] sm:$0xff] 0.0
          %274 = vst [vmem:[#allocation2 + $0x20] sm:$0xff] 0.0
          %275 = vst [vmem:[#allocation2 + $0x28] sm:$0xff] 0.0
          %276 = vst [vmem:[#allocation2 + $0x30] sm:$0xff] 0.0
          %277 = vst [vmem:[#allocation2 + $0x38] sm:$0xff] 0.0
          %278 = vst [vmem:[#allocation2 + $0x40] sm:$0xff] 0.0
          %279 = vst [vmem:[#allocation2 + $0x48] sm:$0xff] 0.0
          %280 = vst [vmem:[#allocation2 + $0x50] sm:$0xff] 0.0
          %281 = vst [vmem:[#allocation2 + $0x58] sm:$0xff] 0.0
          %282 = vst [vmem:[#allocation2 + $0x60] sm:$0xff] 0.0
          %283 = vst [vmem:[#allocation2 + $0x68] sm:$0xff] 0.0
          %284 = vst [vmem:[#allocation2 + $0x70] sm:$0xff] 0.0
          %285 = vst [vmem:[#allocation2 + $0x78] sm:$0xff] 0.0
          %286 = vst [vmem:[#allocation2 + $0x80] sm:$0xff] 0.0
          %287 = vst [vmem:[#allocation2 + $0x88] sm:$0xff] 0.0
          %288 = vst [vmem:[#allocation2 + $0x90] sm:$0xff] 0.0
          %289 = vst [vmem:[#allocation2 + $0x98] sm:$0xff] 0.0
          %290 = vst [vmem:[#allocation2 + $0xa0] sm:$0xff] 0.0
          %291 = vst [vmem:[#allocation2 + $0xa8] sm:$0xff] 0.0
          %292 = vst [vmem:[#allocation2 + $0xb0] sm:$0xff] 0.0
          %293 = vst [vmem:[#allocation2 + $0xb8] sm:$0xff] 0.0
          %294 = vst [vmem:[#allocation2 + $0xc0] sm:$0xff] 0.0
          %295 = vst [vmem:[#allocation2 + $0xc8] sm:$0xff] 0.0
          %296 = vst [vmem:[#allocation2 + $0xd0] sm:$0xff] 0.0
          %297 = vst [vmem:[#allocation2 + $0xd8] sm:$0xff] 0.0
          %298 = vst [vmem:[#allocation2 + $0xe0] sm:$0xff] 0.0
          %299 = vst [vmem:[#allocation2 + $0xe8] sm:$0xff] 0.0
          %300 = vst [vmem:[#allocation2 + $0xf0] sm:$0xff] 0.0
          %301 = vst [vmem:[#allocation2 + $0xf8] sm:$0xff] 0.0
        $region44: #{tpu_custom_call.1} parent=31 // pred_fallthru
          _
        %v302 = vld [vmem:[#allocation2] sm:$0xff]
        %v303 = vld [vmem:[#allocation2 + $0x8] sm:$0xff]
        %v304 = vld [vmem:[#allocation2 + $0x10] sm:$0xff]
        %v305 = vld [vmem:[#allocation2 + $0x18] sm:$0xff]
        %v306 = vld [vmem:[#allocation2 + $0x20] sm:$0xff]
        %v307 = vld [vmem:[#allocation2 + $0x28] sm:$0xff]
        %v308 = vld [vmem:[#allocation2 + $0x30] sm:$0xff]
        %v309 = vld [vmem:[#allocation2 + $0x38] sm:$0xff]
        %v310 = vld [vmem:[#allocation2 + $0x40] sm:$0xff]
        %v311 = vld [vmem:[#allocation2 + $0x48] sm:$0xff]
        %v312 = vld [vmem:[#allocation2 + $0x50] sm:$0xff]
        %v313 = vld [vmem:[#allocation2 + $0x58] sm:$0xff]
        %v314 = vld [vmem:[#allocation2 + $0x60] sm:$0xff]
        %v315 = vld [vmem:[#allocation2 + $0x68] sm:$0xff]
        %v316 = vld [vmem:[#allocation2 + $0x70] sm:$0xff]
        %v317 = vld [vmem:[#allocation2 + $0x78] sm:$0xff]
        %v318 = vld [vmem:[#allocation2 + $0x80] sm:$0xff]
        %v319 = vld [vmem:[#allocation2 + $0x88] sm:$0xff]
        %v320 = vld [vmem:[#allocation2 + $0x90] sm:$0xff]
        %v321 = vld [vmem:[#allocation2 + $0x98] sm:$0xff]
        %v322 = vld [vmem:[#allocation2 + $0xa0] sm:$0xff]
        %v323 = vld [vmem:[#allocation2 + $0xa8] sm:$0xff]
        %v324 = vld [vmem:[#allocation2 + $0xb0] sm:$0xff]
        %v325 = vld [vmem:[#allocation2 + $0xb8] sm:$0xff]
        %v326 = vld [vmem:[#allocation2 + $0xc0] sm:$0xff]
        %v327 = vld [vmem:[#allocation2 + $0xc8] sm:$0xff]
        %v328 = vld [vmem:[#allocation2 + $0xd0] sm:$0xff]
        %v329 = vld [vmem:[#allocation2 + $0xd8] sm:$0xff]
        %v330 = vld [vmem:[#allocation2 + $0xe0] sm:$0xff]
        %v331 = vld [vmem:[#allocation2 + $0xe8] sm:$0xff]
        %v332 = vld [vmem:[#allocation2 + $0xf0] sm:$0xff]
        %v333 = vld [vmem:[#allocation2 + $0xf8] sm:$0xff]
        %v334 = vld [vmem:[%s225] sm:$0xff]
        %v335 = vld [vmem:[%s225 + $0x8] sm:$0xff]
        %v336 = vld [vmem:[%s225 + $0x10] sm:$0xff]
        %v337 = vld [vmem:[%s225 + $0x18] sm:$0xff]
        %v338 = vld [vmem:[%s225 + $0x20] sm:$0xff]
        %v339 = vld [vmem:[%s225 + $0x28] sm:$0xff]
        %v340 = vld [vmem:[%s225 + $0x30] sm:$0xff]
        %v341 = vld [vmem:[%s225 + $0x38] sm:$0xff]
        %v342 = vld [vmem:[%s225 + $0x40] sm:$0xff]
        %v343 = vld [vmem:[%s225 + $0x48] sm:$0xff]
        %v344 = vld [vmem:[%s225 + $0x50] sm:$0xff]
        %v345 = vld [vmem:[%s225 + $0x58] sm:$0xff]
        %v346 = vld [vmem:[%s225 + $0x60] sm:$0xff]
        %v347 = vld [vmem:[%s225 + $0x68] sm:$0xff]
        %v348 = vld [vmem:[%s225 + $0x70] sm:$0xff]
        %v349 = vld [vmem:[%s225 + $0x78] sm:$0xff]
        %v350 = vld [vmem:[#allocation6] sm:$0xff]
        %v351 = vld [vmem:[#allocation6 + $0x8] sm:$0xff]
        %v352 = vld [vmem:[#allocation6 + $0x10] sm:$0xff]
        %v353 = vld [vmem:[#allocation6 + $0x18] sm:$0xff]
        %v354 = vld [vmem:[#allocation6 + $0x20] sm:$0xff]
        %v355 = vld [vmem:[#allocation6 + $0x28] sm:$0xff]
        %v356 = vld [vmem:[#allocation6 + $0x30] sm:$0xff]
        %v357 = vld [vmem:[#allocation6 + $0x38] sm:$0xff]
        %v358 = vld [vmem:[#allocation6 + $0x40] sm:$0xff]
        %v359 = vld [vmem:[#allocation6 + $0x48] sm:$0xff]
        %v360 = vld [vmem:[#allocation6 + $0x50] sm:$0xff]
        %v361 = vld [vmem:[#allocation6 + $0x58] sm:$0xff]
        %v362 = vld [vmem:[#allocation6 + $0x60] sm:$0xff]
        %v363 = vld [vmem:[#allocation6 + $0x68] sm:$0xff]
        %v364 = vld [vmem:[#allocation6 + $0x70] sm:$0xff]
        %v365 = vld [vmem:[#allocation6 + $0x78] sm:$0xff]
        %v366 = vld [vmem:[#allocation6 + $0x80] sm:$0xff]
        %v367 = vld [vmem:[#allocation6 + $0x88] sm:$0xff]
        %v368 = vld [vmem:[#allocation6 + $0x90] sm:$0xff]
        %v369 = vld [vmem:[#allocation6 + $0x98] sm:$0xff]
        %v370 = vld [vmem:[#allocation6 + $0xa0] sm:$0xff]
        %v371 = vld [vmem:[#allocation6 + $0xa8] sm:$0xff]
        %v372 = vld [vmem:[#allocation6 + $0xb0] sm:$0xff]
        %v373 = vld [vmem:[#allocation6 + $0xb8] sm:$0xff]
        %v374 = vld [vmem:[#allocation6 + $0xc0] sm:$0xff]
        %v375 = vld [vmem:[#allocation6 + $0xc8] sm:$0xff]
        %v376 = vld [vmem:[#allocation6 + $0xd0] sm:$0xff]
        %v377 = vld [vmem:[#allocation6 + $0xd8] sm:$0xff]
        %v378 = vld [vmem:[#allocation6 + $0xe0] sm:$0xff]
        %v379 = vld [vmem:[#allocation6 + $0xe8] sm:$0xff]
        %v380 = vld [vmem:[#allocation6 + $0xf0] sm:$0xff]
        %v381 = vld [vmem:[#allocation6 + $0xf8] sm:$0xff]
        %382 = vmatprep.subr.mxu0 %v351
        %383 = vmatpush1.msra.mxu0 %v350
        %384 = vmatprep.subr.mxu0 %v353
        %385 = vmatpush1.msra.mxu0 %v352
        %386 = vmatprep.subr.mxu0 %v355
        %387 = vmatpush1.msra.mxu0 %v354
        %388 = vmatprep.subr.mxu0 %v357
        %389 = vmatpush1.msra.mxu0 %v356
        %390 = vmatprep.subr.mxu0 %v359
        %391 = vmatpush1.msra.mxu0 %v358
        %392 = vmatprep.subr.mxu0 %v361
        %393 = vmatpush1.msra.mxu0 %v360
        %394 = vmatprep.subr.mxu0 %v363
        %395 = vmatpush1.msra.mxu0 %v362
        %396 = vmatprep.subr.mxu0 %v365
        %397 = vmatpush1.msra.mxu0 %v364
        %398 = vmatprep.subr.mxu0 %v367
        %399 = vmatpush1.msra.mxu0 %v366
        %400 = vmatprep.subr.mxu0 %v369
        %401 = vmatpush1.msra.mxu0 %v368
        %402 = vmatprep.subr.mxu0 %v371
        %403 = vmatpush1.msra.mxu0 %v370
        %404 = vmatprep.subr.mxu0 %v373
        %405 = vmatpush1.msra.mxu0 %v372
        %406 = vmatprep.subr.mxu0 %v375
        %407 = vmatpush1.msra.mxu0 %v374
        %408 = vmatprep.subr.mxu0 %v377
        %409 = vmatpush1.msra.mxu0 %v376
        %410 = vmatprep.subr.mxu0 %v379
        %411 = vmatpush1.msra.mxu0 %v378
        %412 = vmatprep.subr.mxu0 %v381
        %413 = vmatpush1.msra.mxu0 %v380
        %414 = vmatprep.subr.mxu0 0.0
        %415 = vmatpush1.msra.mxu0 0.0
        %416 = vmatprep.subr.mxu0 0.0
        %417 = vmatpush1.msra.mxu0 0.0
        %418 = vmatprep.subr.mxu0 0.0
        %419 = vmatpush1.msra.mxu0 0.0
        %420 = vmatprep.subr.mxu0 0.0
        %421 = vmatpush1.msra.mxu0 0.0
        %422 = vmatprep.subr.mxu0 0.0
        %423 = vmatpush1.msra.mxu0 0.0
        %424 = vmatprep.subr.mxu0 0.0
        %425 = vmatpush1.msra.mxu0 0.0
        %426 = vmatprep.subr.mxu0 0.0
        %427 = vmatpush1.msra.mxu0 0.0
        %428 = vmatprep.subr.mxu0 0.0
        %429 = vmatpush1.msra.mxu0 0.0
        %430 = vmatprep.subr.mxu0 0.0
        %431 = vmatpush1.msra.mxu0 0.0
        %432 = vmatprep.subr.mxu0 0.0
        %433 = vmatpush1.msra.mxu0 0.0
        %434 = vmatprep.subr.mxu0 0.0
        %435 = vmatpush1.msra.mxu0 0.0
        %436 = vmatprep.subr.mxu0 0.0
        %437 = vmatpush1.msra.mxu0 0.0
        %438 = vmatprep.subr.mxu0 0.0
        %439 = vmatpush1.msra.mxu0 0.0
        %440 = vmatprep.subr.mxu0 0.0
        %441 = vmatpush1.msra.mxu0 0.0
        %442 = vmatprep.subr.mxu0 0.0
        %443 = vmatpush1.msra.mxu0 0.0
        %444 = vmatprep.subr.mxu0 0.0
        %445 = vmatpush1.msra.mxu0 0.0
        %446 = vmatprep.mubr.f32.mxu0 0.0
        %447 = vmatmul.mubr.f32.gmra.mrb[0].mxu0 %v334
        %v448 = vpop.f32.mrb[0].mxu0
        %v449 = vadd.f32 0.0, %v448
        %v450 = vpop.f32.mrb[0].mxu0
        %v451 = vadd.f32 0.0, %v450
        %452 = vmatprep.mubr.f32.mxu0 0.0
        %453 = vmatmul.mubr.f32.gmra.mrb[0].mxu0 %v335
        %v454 = vpop.f32.mrb[0].mxu0
        %v455 = vadd.f32 0.0, %v454
        %v456 = vpop.f32.mrb[0].mxu0
        %v457 = vadd.f32 0.0, %v456
        %458 = vmatprep.mubr.f32.mxu0 0.0
        %459 = vmatmul.mubr.f32.gmra.mrb[0].mxu0 %v336
        %v460 = vpop.f32.mrb[0].mxu0
        %v461 = vadd.f32 0.0, %v460
        %v462 = vpop.f32.mrb[0].mxu0
        %v463 = vadd.f32 0.0, %v462
        %464 = vmatprep.mubr.f32.mxu0 0.0
        %465 = vmatmul.mubr.f32.gmra.mrb[0].mxu0 %v337
        %v466 = vpop.f32.mrb[0].mxu0
        %v467 = vadd.f32 0.0, %v466
        %v468 = vpop.f32.mrb[0].mxu0
        %v469 = vadd.f32 0.0, %v468
        %470 = vmatprep.mubr.f32.mxu0 0.0
        %471 = vmatmul.mubr.f32.gmra.mrb[0].mxu0 %v338
        %v472 = vpop.f32.mrb[0].mxu0
        %v473 = vadd.f32 0.0, %v472
        %v474 = vpop.f32.mrb[0].mxu0
        %v475 = vadd.f32 0.0, %v474
        %476 = vmatprep.mubr.f32.mxu0 0.0
        %477 = vmatmul.mubr.f32.gmra.mrb[0].mxu0 %v339
        %v478 = vpop.f32.mrb[0].mxu0
        %v479 = vadd.f32 0.0, %v478
        %v480 = vpop.f32.mrb[0].mxu0
        %v481 = vadd.f32 0.0, %v480
        %482 = vmatprep.mubr.f32.mxu0 0.0
        %483 = vmatmul.mubr.f32.gmra.mrb[0].mxu0 %v340
        %v484 = vpop.f32.mrb[0].mxu0
        %v485 = vadd.f32 0.0, %v484
        %v486 = vpop.f32.mrb[0].mxu0
        %v487 = vadd.f32 0.0, %v486
        %488 = vmatprep.mubr.f32.mxu0 0.0
        %489 = vmatmul.mubr.f32.gmra.mrb[0].mxu0 %v341
        %v490 = vpop.f32.mrb[0].mxu0
        %v491 = vadd.f32 0.0, %v490
        %v492 = vpop.f32.mrb[0].mxu0
        %v493 = vadd.f32 0.0, %v492
        %494 = vmatprep.mubr.f32.mxu0 0.0
        %495 = vmatmul.mubr.f32.gmra.mrb[0].mxu0 %v342
        %v496 = vpop.f32.mrb[0].mxu0
        %v497 = vadd.f32 0.0, %v496
        %v498 = vpop.f32.mrb[0].mxu0
        %v499 = vadd.f32 0.0, %v498
        %500 = vmatprep.mubr.f32.mxu0 0.0
        %501 = vmatmul.mubr.f32.gmra.mrb[0].mxu0 %v343
        %v502 = vpop.f32.mrb[0].mxu0
        %v503 = vadd.f32 0.0, %v502
        %v504 = vpop.f32.mrb[0].mxu0
        %v505 = vadd.f32 0.0, %v504
        %506 = vmatprep.mubr.f32.mxu0 0.0
        %507 = vmatmul.mubr.f32.gmra.mrb[0].mxu0 %v344
        %v508 = vpop.f32.mrb[0].mxu0
        %v509 = vadd.f32 0.0, %v508
        %v510 = vpop.f32.mrb[0].mxu0
        %v511 = vadd.f32 0.0, %v510
        %512 = vmatprep.mubr.f32.mxu0 0.0
        %513 = vmatmul.mubr.f32.gmra.mrb[0].mxu0 %v345
        %v514 = vpop.f32.mrb[0].mxu0
        %v515 = vadd.f32 0.0, %v514
        %v516 = vpop.f32.mrb[0].mxu0
        %v517 = vadd.f32 0.0, %v516
        %518 = vmatprep.mubr.f32.mxu0 0.0
        %519 = vmatmul.mubr.f32.gmra.mrb[0].mxu0 %v346
        %v520 = vpop.f32.mrb[0].mxu0
        %v521 = vadd.f32 0.0, %v520
        %v522 = vpop.f32.mrb[0].mxu0
        %v523 = vadd.f32 0.0, %v522
        %524 = vmatprep.mubr.f32.mxu0 0.0
        %525 = vmatmul.mubr.f32.gmra.mrb[0].mxu0 %v347
        %v526 = vpop.f32.mrb[0].mxu0
        %v527 = vadd.f32 0.0, %v526
        %v528 = vpop.f32.mrb[0].mxu0
        %v529 = vadd.f32 0.0, %v528
        %530 = vmatprep.mubr.f32.mxu0 0.0
        %531 = vmatmul.mubr.f32.gmra.mrb[0].mxu0 %v348
        %v532 = vpop.f32.mrb[0].mxu0
        %v533 = vadd.f32 0.0, %v532
        %v534 = vpop.f32.mrb[0].mxu0
        %v535 = vadd.f32 0.0, %v534
        %536 = vmatprep.mubr.f32.mxu0 0.0
        %537 = vmatmul.mubr.f32.gmra.mrb[0].mxu0 %v349
        %v538 = vpop.f32.mrb[0].mxu0
        %v539 = vadd.f32 0.0, %v538
        %v540 = vpop.f32.mrb[0].mxu0
        %v541 = vadd.f32 0.0, %v540
        %542 = vdwg.mxu0
        %v543 = vadd.f32 %v302, %v449
        %v544 = vadd.f32 %v303, %v451
        %v545 = vadd.f32 %v304, %v455
        %v546 = vadd.f32 %v305, %v457
        %v547 = vadd.f32 %v306, %v461
        %v548 = vadd.f32 %v307, %v463
        %v549 = vadd.f32 %v308, %v467
        %v550 = vadd.f32 %v309, %v469
        %v551 = vadd.f32 %v310, %v473
        %v552 = vadd.f32 %v311, %v475
        %v553 = vadd.f32 %v312, %v479
        %v554 = vadd.f32 %v313, %v481
        %v555 = vadd.f32 %v314, %v485
        %v556 = vadd.f32 %v315, %v487
        %v557 = vadd.f32 %v316, %v491
        %v558 = vadd.f32 %v317, %v493
        %v559 = vadd.f32 %v318, %v497
        %v560 = vadd.f32 %v319, %v499
        %v561 = vadd.f32 %v320, %v503
        %v562 = vadd.f32 %v321, %v505
        %v563 = vadd.f32 %v322, %v509
        %v564 = vadd.f32 %v323, %v511
        %v565 = vadd.f32 %v324, %v515
        %v566 = vadd.f32 %v325, %v517
        %v567 = vadd.f32 %v326, %v521
        %v568 = vadd.f32 %v327, %v523
        %v569 = vadd.f32 %v328, %v527
        %v570 = vadd.f32 %v329, %v529
        %v571 = vadd.f32 %v330, %v533
        %v572 = vadd.f32 %v331, %v535
        %v573 = vadd.f32 %v332, %v539
        %v574 = vadd.f32 %v333, %v541
        %575 = vst [vmem:[#allocation2] sm:$0xff] %v543
        %576 = vst [vmem:[#allocation2 + $0x8] sm:$0xff] %v544
        %577 = vst [vmem:[#allocation2 + $0x10] sm:$0xff] %v545
        %578 = vst [vmem:[#allocation2 + $0x18] sm:$0xff] %v546
        %579 = vst [vmem:[#allocation2 + $0x20] sm:$0xff] %v547
        %580 = vst [vmem:[#allocation2 + $0x28] sm:$0xff] %v548
        %581 = vst [vmem:[#allocation2 + $0x30] sm:$0xff] %v549
        %582 = vst [vmem:[#allocation2 + $0x38] sm:$0xff] %v550
        %583 = vst [vmem:[#allocation2 + $0x40] sm:$0xff] %v551
        %584 = vst [vmem:[#allocation2 + $0x48] sm:$0xff] %v552
        %585 = vst [vmem:[#allocation2 + $0x50] sm:$0xff] %v553
        %586 = vst [vmem:[#allocation2 + $0x58] sm:$0xff] %v554
        %587 = vst [vmem:[#allocation2 + $0x60] sm:$0xff] %v555
        %588 = vst [vmem:[#allocation2 + $0x68] sm:$0xff] %v556
        %589 = vst [vmem:[#allocation2 + $0x70] sm:$0xff] %v557
        %590 = vst [vmem:[#allocation2 + $0x78] sm:$0xff] %v558
        %591 = vst [vmem:[#allocation2 + $0x80] sm:$0xff] %v559
        %592 = vst [vmem:[#allocation2 + $0x88] sm:$0xff] %v560
        %593 = vst [vmem:[#allocation2 + $0x90] sm:$0xff] %v561
        %594 = vst [vmem:[#allocation2 + $0x98] sm:$0xff] %v562
        %595 = vst [vmem:[#allocation2 + $0xa0] sm:$0xff] %v563
        %596 = vst [vmem:[#allocation2 + $0xa8] sm:$0xff] %v564
        %597 = vst [vmem:[#allocation2 + $0xb0] sm:$0xff] %v565
        %598 = vst [vmem:[#allocation2 + $0xb8] sm:$0xff] %v566
        %599 = vst [vmem:[#allocation2 + $0xc0] sm:$0xff] %v567
        %600 = vst [vmem:[#allocation2 + $0xc8] sm:$0xff] %v568
        %601 = vst [vmem:[#allocation2 + $0xd0] sm:$0xff] %v569
        %602 = vst [vmem:[#allocation2 + $0xd8] sm:$0xff] %v570
        %603 = vst [vmem:[#allocation2 + $0xe0] sm:$0xff] %v571
        %604 = vst [vmem:[#allocation2 + $0xe8] sm:$0xff] %v572
        %605 = vst [vmem:[#allocation2 + $0xf0] sm:$0xff] %v573
        %606 = vst [vmem:[#allocation2 + $0xf8] sm:$0xff] %v574
        // Predicated region
        $region45: #{tpu_custom_call.1} parent=31 // pred_check
          %p607 = pneg %p266
        $region46: #{tpu_custom_call.1} parent=31 // pred_check_branch
          %609 = sbr.rel (%p607) target = $region48
        $region47: #{tpu_custom_call.1} parent=31 // pred_region
          %v610 = vld [vmem:[#allocation2] sm:$0xff]
          %v611 = vld [vmem:[#allocation2 + $0x8] sm:$0xff]
          %v612 = vld [vmem:[#allocation2 + $0x10] sm:$0xff]
          %v613 = vld [vmem:[#allocation2 + $0x18] sm:$0xff]
          %v614 = vld [vmem:[#allocation2 + $0x20] sm:$0xff]
          %v615 = vld [vmem:[#allocation2 + $0x28] sm:$0xff]
          %v616 = vld [vmem:[#allocation2 + $0x30] sm:$0xff]
          %v617 = vld [vmem:[#allocation2 + $0x38] sm:$0xff]
          %v618 = vld [vmem:[#allocation2 + $0x40] sm:$0xff]
          %v619 = vld [vmem:[#allocation2 + $0x48] sm:$0xff]
          %v620 = vld [vmem:[#allocation2 + $0x50] sm:$0xff]
          %v621 = vld [vmem:[#allocation2 + $0x58] sm:$0xff]
          %v622 = vld [vmem:[#allocation2 + $0x60] sm:$0xff]
          %v623 = vld [vmem:[#allocation2 + $0x68] sm:$0xff]
          %v624 = vld [vmem:[#allocation2 + $0x70] sm:$0xff]
          %v625 = vld [vmem:[#allocation2 + $0x78] sm:$0xff]
          %v626 = vld [vmem:[#allocation2 + $0x80] sm:$0xff]
          %v627 = vld [vmem:[#allocation2 + $0x88] sm:$0xff]
          %v628 = vld [vmem:[#allocation2 + $0x90] sm:$0xff]
          %v629 = vld [vmem:[#allocation2 + $0x98] sm:$0xff]
          %v630 = vld [vmem:[#allocation2 + $0xa0] sm:$0xff]
          %v631 = vld [vmem:[#allocation2 + $0xa8] sm:$0xff]
          %v632 = vld [vmem:[#allocation2 + $0xb0] sm:$0xff]
          %v633 = vld [vmem:[#allocation2 + $0xb8] sm:$0xff]
          %v634 = vld [vmem:[#allocation2 + $0xc0] sm:$0xff]
          %v635 = vld [vmem:[#allocation2 + $0xc8] sm:$0xff]
          %v636 = vld [vmem:[#allocation2 + $0xd0] sm:$0xff]
          %v637 = vld [vmem:[#allocation2 + $0xd8] sm:$0xff]
          %v638 = vld [vmem:[#allocation2 + $0xe0] sm:$0xff]
          %v639 = vld [vmem:[#allocation2 + $0xe8] sm:$0xff]
          %v640 = vld [vmem:[#allocation2 + $0xf0] sm:$0xff]
          %v641 = vld [vmem:[#allocation2 + $0xf8] sm:$0xff]
          %v642 = vld [vmem:[%s262] sm:$0x3]
          %v644 = vlaneseq
          %v645 = vshrl.u32 %v644, 7
          %v646 = vsub.s32 0, %v645
          %v647 = vrot.slane %v642, %v646
          %v648 = vlaneseq
          %v649 = vshrl.u32 %v648, 7
          %v650 = vsub.s32 1, %v649
          %v651 = vrot.slane %v642, %v650
          %v654 = vadd.f32 %v610, %v647
          %v655 = vadd.f32 %v611, %v651
          %v656 = vadd.f32 %v612, %v647
          %v657 = vadd.f32 %v613, %v651
          %v658 = vadd.f32 %v614, %v647
          %v659 = vadd.f32 %v615, %v651
          %v660 = vadd.f32 %v616, %v647
          %v661 = vadd.f32 %v617, %v651
          %v662 = vadd.f32 %v618, %v647
          %v663 = vadd.f32 %v619, %v651
          %v664 = vadd.f32 %v620, %v647
          %v665 = vadd.f32 %v621, %v651
          %v666 = vadd.f32 %v622, %v647
          %v667 = vadd.f32 %v623, %v651
          %v668 = vadd.f32 %v624, %v647
          %v669 = vadd.f32 %v625, %v651
          %v670 = vadd.f32 %v626, %v647
          %v671 = vadd.f32 %v627, %v651
          %v672 = vadd.f32 %v628, %v647
          %v673 = vadd.f32 %v629, %v651
          %v674 = vadd.f32 %v630, %v647
          %v675 = vadd.f32 %v631, %v651
          %v676 = vadd.f32 %v632, %v647
          %v677 = vadd.f32 %v633, %v651
          %v678 = vadd.f32 %v634, %v647
          %v679 = vadd.f32 %v635, %v651
          %v680 = vadd.f32 %v636, %v647
          %v681 = vadd.f32 %v637, %v651
          %v682 = vadd.f32 %v638, %v647
          %v683 = vadd.f32 %v639, %v651
          %v684 = vadd.f32 %v640, %v647
          %v685 = vadd.f32 %v641, %v651
          %686 = vst [vmem:[%s255] sm:$0xff] %v654
          %687 = vst [vmem:[%s255 + $0x8] sm:$0xff] %v655
          %688 = vst [vmem:[%s255 + $0x10] sm:$0xff] %v656
          %689 = vst [vmem:[%s255 + $0x18] sm:$0xff] %v657
          %690 = vst [vmem:[%s255 + $0x20] sm:$0xff] %v658
          %691 = vst [vmem:[%s255 + $0x28] sm:$0xff] %v659
          %692 = vst [vmem:[%s255 + $0x30] sm:$0xff] %v660
          %693 = vst [vmem:[%s255 + $0x38] sm:$0xff] %v661
          %694 = vst [vmem:[%s255 + $0x40] sm:$0xff] %v662
          %695 = vst [vmem:[%s255 + $0x48] sm:$0xff] %v663
          %696 = vst [vmem:[%s255 + $0x50] sm:$0xff] %v664
          %697 = vst [vmem:[%s255 + $0x58] sm:$0xff] %v665
          %698 = vst [vmem:[%s255 + $0x60] sm:$0xff] %v666
          %699 = vst [vmem:[%s255 + $0x68] sm:$0xff] %v667
          %700 = vst [vmem:[%s255 + $0x70] sm:$0xff] %v668
          %701 = vst [vmem:[%s255 + $0x78] sm:$0xff] %v669
          %702 = vst [vmem:[%s255 + $0x80] sm:$0xff] %v670
          %703 = vst [vmem:[%s255 + $0x88] sm:$0xff] %v671
          %704 = vst [vmem:[%s255 + $0x90] sm:$0xff] %v672
          %705 = vst [vmem:[%s255 + $0x98] sm:$0xff] %v673
          %706 = vst [vmem:[%s255 + $0xa0] sm:$0xff] %v674
          %707 = vst [vmem:[%s255 + $0xa8] sm:$0xff] %v675
          %708 = vst [vmem:[%s255 + $0xb0] sm:$0xff] %v676
          %709 = vst [vmem:[%s255 + $0xb8] sm:$0xff] %v677
          %710 = vst [vmem:[%s255 + $0xc0] sm:$0xff] %v678
          %711 = vst [vmem:[%s255 + $0xc8] sm:$0xff] %v679
          %712 = vst [vmem:[%s255 + $0xd0] sm:$0xff] %v680
          %713 = vst [vmem:[%s255 + $0xd8] sm:$0xff] %v681
          %714 = vst [vmem:[%s255 + $0xe0] sm:$0xff] %v682
          %715 = vst [vmem:[%s255 + $0xe8] sm:$0xff] %v683
          %716 = vst [vmem:[%s255 + $0xf0] sm:$0xff] %v684
          %717 = vst [vmem:[%s255 + $0xf8] sm:$0xff] %v685
        $region48: #{tpu_custom_call.1} parent=31 // pred_fallthru
          _
        %s718 = sand.u32 %s132, 1
        %s719 = scalar_lea.sflag [#allocation5], %s718
        %s720 = sand.u32 %s132, 1
        %s721 = smul.addr %s720, 256
        %s722 = scalar_lea.vmem [#allocation8], %s721
        // Predicated region
        $region49: #{tpu_custom_call.1} parent=31 // pred_check
          %p723 = pneg %p142
        $region50: #{tpu_custom_call.1} parent=31 // pred_check_branch
          %725 = sbr.rel (%p723) target = $region52
        $region51: #{tpu_custom_call.1} parent=31 // pred_region
          %s726 = smul.u32 16, %s26
          %s727 = smul.u32 2, %s27
          %s729 = ssub.s32 4096, 4096
          %730 = vsyncadd %s719, %s729
          %s731 = smul.addr %s726, 2
          %s732 = sadd.s32 %s727, %s731
          %s733 = smul.addr %s732, 128
          %s734 = scalar_lea.hbm %s3, %s733
          %s735 = sshll.u32 %s722, 4
          %s736 = int_to_ptr.vmem [resolvable:$true] %s735
          %741 = dma.vmem_to_hbm [thread:$0]  %s736, 4096, %s734, %s719, 256, 256, 16
        $region52: #{tpu_custom_call.1} parent=31 // pred_fallthru
          _
      $region32: #{tpu_custom_call.1} parent=5 // pred_fallthru
        _
      %p742 = scmp.le.s32.totalorder 2, %s16
      // Predicated region
      $region53: #{tpu_custom_call.1} parent=5 // pred_check
        %p743 = pneg %p742
      $region54: #{tpu_custom_call.1} parent=5 // pred_check_branch
        %745 = sbr.rel (%p743) target = $region56
      $region55: #{tpu_custom_call.1} parent=5 // pred_region
        %s746 = ssub.s32 %s16, 2
        // Predicated region
        $region57: #{tpu_custom_call.1} parent=55 // pred_check
          %p747 = pneg %p148
        $region58: #{tpu_custom_call.1} parent=55 // pred_check_branch
          %749 = sbr.rel (%p747) target = $region60
        $region59: #{tpu_custom_call.1} parent=55 // pred_region
          %s750 = sand.u32 %s133, 1
          %s751 = scalar_lea.sflag [#allocation5], %s750
          %s752 = sand.u32 %s133, 1
          %s753 = smul.addr %s752, 256
          %s754 = scalar_lea.vmem [#allocation8], %s753
          %755 = dma.done %s751, 4096
        $region60: #{tpu_custom_call.1} parent=55 // pred_fallthru
          _
      $region56: #{tpu_custom_call.1} parent=5 // pred_fallthru
        _
    $region6: #{tpu_custom_call.1} parent=1 // loop_footer
      %s20 = sadd.s32 1, %s16
    $region7: #{tpu_custom_call.1} parent=1 // loop_footer_branch
      %15 = sbr.rel target = $region3
    $region8: #{tpu_custom_call.1} parent=1 // loop_exit
      _
    %756 = vsyncpa [#allocation4], 1
    %s757 = scalar_lea.sflag [#allocation4], 1
    %758 = vsyncpa %s757, 1
    %759 = vsyncpa [#allocation7], 1
    %760 = vsyncpa [#allocation5], 1
    %s761 = scalar_lea.sflag [#allocation5], 1
    %762 = vsyncpa %s761, 1

</llo_original>
